<compile_context>
chip_gen: v7x
topology: tpu7x:2x2x1
jax: 0.10.0
libtpu: 0.0.40
codegen_flags: <defaults>
</compile_context>

<pallas_src>
import functools

import jax
import jax.numpy as jnp
from jax.experimental import pallas as pl
from jax.experimental.pallas import tpu as pltpu

_LANE = 128
_MAX_TR = 2048           # cap on rows-of-128-lanes per grid step
_F32_TEMP_PLANES = 8     # conservative count of live (TR,128) f32 temporaries


def _round_up(x, m):
    return -(-x // m) * m


def _tpu_vmem_capacity_bytes():
    try:
        return int(pltpu.get_tpu_info().vmem_capacity_bytes)
    except Exception:
        return 64 * 1024 * 1024          # v7x-safe fallback


def _choose_tiling(n_pixels, n_channels, x_itemsize, max_rows_override=None):
    """Pick (label_dtype, padded_rows Rp, rows_per_tile TR)."""
    r = -(-n_pixels // _LANE)                       # rows of 128 lanes needed
    lane_aligned = (n_pixels == r * _LANE)

    # int8 labels cut label HBM traffic 4x, but int8 tiles are (32,128); never
    # force a whole-tensor pad copy on lane-aligned inputs just to use them.
    if n_channels <= 127 and (not lane_aligned or r % 32 == 0 or r < 32):
        label_dtype, sub = jnp.int8, 32
    else:
        label_dtype, sub = jnp.int32, 8

    gt_itemsize = jnp.dtype(label_dtype).itemsize
    bytes_per_row = _LANE * (
        2 * (n_channels * x_itemsize + gt_itemsize)   # double-buffered inputs
        + 4 * _F32_TEMP_PLANES)                       # in-kernel f32 temps
    sizing_budget = _tpu_vmem_capacity_bytes() // 2   # leave ample headroom
    max_tr = max(sub, min(_MAX_TR, sizing_budget // bytes_per_row))
    if max_rows_override is not None:
        max_tr = max(sub, min(max_tr, max_rows_override))
    max_tr -= max_tr % sub

    rp = _round_up(r, sub)
    if rp <= max_tr:
        return label_dtype, rp, rp                    # one pixel tile / batch

    # Prefer a divisor of rp (no extra row padding == no jnp.pad HBM copy for
    # lane-aligned inputs); only pad rows if no reasonably large divisor.
    min_ok = max(sub, min(256, max_tr // 8))
    tr = 0
    d = max_tr
    while d >= min_ok:
        if rp % d == 0:
            tr = d
            break
        d -= sub
    if tr == 0:
        tr = max_tr
        rp = _round_up(rp, tr)
    return label_dtype, rp, tr


def _tversky_kernel(x_ref, gt_ref, out_ref, *, n_channels):
    """Accumulate the per-(batch, split) intersection sum_n softmax(x)[gt]."""
    # First pixel tile of this (batch, split): zero the resident accumulator.
    @pl.when(pl.program_id(2) == 0)
    def _():
        out_ref[...] = jnp.zeros_like(out_ref)

    gt = gt_ref[0].astype(jnp.int32)         # (TR, 128); -1 marks padding

    # Pass 1: channel-wise max via per-channel loads+casts (no (C,TR,128) f32
    # temp written back through the single vector-store slot).
    m = x_ref[0, 0].astype(jnp.float32)
    for c in range(1, n_channels):
        m = jnp.maximum(m, x_ref[0, c].astype(jnp.float32))

    # Pass 2: den = sum_c exp(x-m); num = sum_c exp(x-m) * onehot(gt).
    den = jnp.zeros_like(m)
    num = jnp.zeros_like(m)
    for c in range(n_channels):
        ec = jnp.exp(x_ref[0, c].astype(jnp.float32) - m)
        den = den + ec
        num = num + jnp.where(gt == c, ec, 0.0)

    # Per-pixel softmax probability of the true class (exactly 0 for padded
    # pixels since their label is -1).  Exact divide keeps 1e-5 parity.
    ratio = num / den                          # (TR, 128)
    tr = ratio.shape[0]
    # vreg-shaped accumulation: pure VPU adds, no per-tile cross-lane reduce.
    out_ref[0, 0] += ratio.reshape(tr // 8, 8, _LANE).sum(axis=0)


def tversky_loss(result, gt, *, alpha=0.5, beta=0.5, smooth=1.0,
                 max_rows_per_tile=None):
    """result: (B, C, H, W) float logits; gt: (B, H, W) integer labels."""
    B, C, H, W = result.shape
    N = H * W
    x_itemsize = jnp.dtype(result.dtype).itemsize

    label_dtype, Rp, TR = _choose_tiling(N, C, x_itemsize, max_rows_per_tile)
    Np = Rp * _LANE

    x = result.reshape(B, C, N)                 # keep producer dtype (bf16 ok)
    labels = gt.reshape(B, N).astype(label_dtype)
    if Np != N:
        # Padded pixels: logits 0, label -1 -> one-hot all-zero -> zero
        # contribution to the intersection.
        x = jnp.pad(x, ((0, 0), (0, 0), (0, Np - N)))
        labels = jnp.pad(labels, ((0, 0), (0, Np - N)), constant_values=-1)
    x = x.reshape(B, C, Rp, _LANE)
    labels = labels.reshape(B, Rp, _LANE)

    total_tiles = Rp // TR
    # Extra parallel axis so a single-image loss still fills both v7x cores.
    S = 2 if (B % 2 == 1 and total_tiles % 2 == 0) else 1
    T = total_tiles // S

    kernel = functools.partial(_tversky_kernel, n_channels=C)

    gt_itemsize = jnp.dtype(label_dtype).itemsize
    cost = pl.CostEstimate(
        flops=int(B * Np * (6 * C + 8)),
        transcendentals=int(B * C * Np),
        bytes_accessed=int(B * C * Np * x_itemsize + B * Np * gt_itemsize
                           + B * S * 8 * _LANE * 4),
    )

    partial = pl.pallas_call(
        kernel,
        out_shape=jax.ShapeDtypeStruct((B, S, 8, _LANE), jnp.float32),
        grid_spec=pltpu.PrefetchScalarGridSpec(
            num_scalar_prefetch=0,
            grid=(B, S, T),
            in_specs=[
                pl.BlockSpec((1, C, TR, _LANE),
                             lambda b, s, t: (b, 0, s * T + t, 0)),
                pl.BlockSpec((1, TR, _LANE),
                             lambda b, s, t: (b, s * T + t, 0)),
            ],
            out_specs=pl.BlockSpec((1, 1, 8, _LANE),
                                   lambda b, s, t: (b, s, 0, 0)),
        ),
        compiler_params=pltpu.CompilerParams(
            dimension_semantics=("parallel", "parallel", "arbitrary"),
            vmem_limit_bytes=min(
                int(_tpu_vmem_capacity_bytes() * 0.85), 112 * 1024 * 1024),
        ),
        cost_estimate=cost,
    )(x, labels)

    # Finalize on (B,) scalars in the wrapper (merges the S splits and keeps
    # the grid race-free).  With every real label a valid class in [0, C):
    #   FP == FN == N - intersection.
    inter = jnp.sum(partial, axis=(1, 2, 3))                     # (B,)
    denom = inter + (alpha + beta) * (float(N) - inter)
    divided = 1.0 - inter / jnp.maximum(denom, smooth)
    return jnp.mean(divided)


def _tversky_loss_ref(result, gt, *, alpha=0.5, beta=0.5, smooth=1.0):
    """Pure-JAX reference mirroring the PyTorch module."""
    B, C, H, W = result.shape
    x = result.reshape(B, C, H * W).astype(jnp.float32)
    p = jax.nn.softmax(x, axis=1)
    y = jax.nn.one_hot(gt.reshape(B, H * W), C, axis=1, dtype=jnp.float32)
    inter = jnp.sum(p * y, axis=2)
    fp = jnp.sum(p * (1.0 - y), axis=2)
    fn = jnp.sum((1.0 - p) * y, axis=2)
    denom = inter + alpha * fp + beta * fn
    divided = 1.0 - jnp.sum(inter, axis=1) / jnp.maximum(
        jnp.sum(denom, axis=1), smooth)
    return divided.mean()


if __name__ == "__main__":
    key = jax.random.PRNGKey(0)
    k1, k2, k3, k4, k5, k6 = jax.random.split(key, 6)

    # Case 1: lane-aligned spatial size (small, exercises the tiny-R pad).
    B, C, H, W = 2, 4, 16, 16
    result = jax.random.normal(k1, (B, C, H, W), dtype=jnp.float32)
    gt = jax.random.randint(k2, (B, H, W), 0, C, dtype=jnp.int32)
    loss = jax.block_until_ready(tversky_loss(result, gt))
    ref = _tversky_loss_ref(result, gt)
    assert jnp.allclose(loss, ref, rtol=1e-5, atol=1e-5), (loss, ref)

    # Case 2: ragged spatial size exercising the lane-padding path (N=192).
    B2, C2, H2, W2 = 2, 4, 8, 24
    result2 = jax.random.normal(k3, (B2, C2, H2, W2), dtype=jnp.float32)
    gt2 = jax.random.randint(k4, (B2, H2, W2), 0, C2, dtype=jnp.int32)
    loss2 = jax.block_until_ready(tversky_loss(result2, gt2))
    ref2 = _tversky_loss_ref(result2, gt2)
    assert jnp.allclose(loss2, ref2, rtol=1e-5, atol=1e-5), (loss2, ref2)

    # Case 3: B=1, multiple pixel tiles, no padding, int8 labels, and the
    # S=2 pixel-parallel split (forced small TR to exercise the grid logic).
    B3, C3, H3, W3 = 1, 5, 128, 128
    result3 = jax.random.normal(k5, (B3, C3, H3, W3), dtype=jnp.float32)
    gt3 = jax.random.randint(k6, (B3, H3, W3), 0, C3, dtype=jnp.int32)
    loss3 = jax.block_until_ready(
        tversky_loss(result3, gt3, max_rows_per_tile=32))
    ref3 = _tversky_loss_ref(result3, gt3)
    assert jnp.allclose(loss3, ref3, rtol=1e-5, atol=1e-5), (loss3, ref3)

    print("KERNEL_OK")
</pallas_src>

<mosaic_0001>
module attributes {stable_mosaic.version = 11 : i64} {
  func.func @_tversky_kernel(%arg0: i32, %arg1: i32, %arg2: i32, %arg3: memref<1x4x32x128xf32, #tpu.memory_space<vmem>>, %arg4: memref<1x32x128xi8, #tpu.memory_space<vmem>>, %arg5: memref<1x1x8x128xf32, #tpu.memory_space<vmem>>) attributes {dimension_semantics = [#tpu.dimension_semantics<parallel>, #tpu.dimension_semantics<parallel>, #tpu.dimension_semantics<arbitrary>], iteration_bounds = array<i64: 2, 1, 1>, scalar_prefetch = 0 : i64, scratch_operands = 0 : i64, tpu.core_type = #tpu.core_type<tc>, window_params = [{transform_indices = @transform_0, window_bounds = array<i64: 1, 4, 32, 128>}, {transform_indices = @transform_1, window_bounds = array<i64: 1, 32, 128>}, {transform_indices = @transform_2, window_bounds = array<i64: 1, 1, 8, 128>}]} {
    %c0_i32 = arith.constant 0 : i32
    %0 = arith.cmpi eq, %arg2, %c0_i32 : i32
    %1 = arith.extui %0 : i1 to i32
    %c0_i32_0 = arith.constant 0 : i32
    %2 = arith.cmpi ne, %1, %c0_i32_0 : i32
    scf.if %2 {
      %cst_47 = arith.constant 0.000000e+00 : f32
      %68 = vector.broadcast %cst_47 : f32 to vector<1x1x8x128xf32>
      %c0_48 = arith.constant 0 : index
      %c0_49 = arith.constant 0 : index
      %c0_50 = arith.constant 0 : index
      %c0_51 = arith.constant 0 : index
      %69 = vector.load %arg5[%c0_48, %c0_49, %c0_50, %c0_51] : memref<1x1x8x128xf32, #tpu.memory_space<vmem>>, vector<1x1x8x128xf32>
      tpu.vector_store %arg5[%c0_48, %c0_49, %c0_50, %c0_51], %68 {strides = array<i32>} : memref<1x1x8x128xf32, #tpu.memory_space<vmem>>, vector<1x1x8x128xf32>,
    } else {
    }
    %c0 = arith.constant 0 : index
    %c0_1 = arith.constant 0 : index
    %c0_2 = arith.constant 0 : index
    %3 = vector.load %arg4[%c0, %c0_1, %c0_2] : memref<1x32x128xi8, #tpu.memory_space<vmem>>, vector<1x32x128xi8>
    %4 = vector.shape_cast %3 : vector<1x32x128xi8> to vector<32x128xi8>
    %5 = arith.extsi %4 : vector<32x128xi8> to vector<32x128xi32>
    %c0_3 = arith.constant 0 : index
    %c0_4 = arith.constant 0 : index
    %c0_5 = arith.constant 0 : index
    %c0_6 = arith.constant 0 : index
    %6 = vector.load %arg3[%c0_3, %c0_4, %c0_5, %c0_6] : memref<1x4x32x128xf32, #tpu.memory_space<vmem>>, vector<1x1x32x128xf32>
    %7 = vector.shape_cast %6 : vector<1x1x32x128xf32> to vector<32x128xf32>
    %c0_7 = arith.constant 0 : index
    %c1 = arith.constant 1 : index
    %c0_8 = arith.constant 0 : index
    %c0_9 = arith.constant 0 : index
    %8 = vector.load %arg3[%c0_7, %c1, %c0_8, %c0_9] : memref<1x4x32x128xf32, #tpu.memory_space<vmem>>, vector<1x1x32x128xf32>
    %9 = vector.shape_cast %8 : vector<1x1x32x128xf32> to vector<32x128xf32>
    %10 = arith.maximumf %7, %9 : vector<32x128xf32>
    %c0_10 = arith.constant 0 : index
    %c2 = arith.constant 2 : index
    %c0_11 = arith.constant 0 : index
    %c0_12 = arith.constant 0 : index
    %11 = vector.load %arg3[%c0_10, %c2, %c0_11, %c0_12] : memref<1x4x32x128xf32, #tpu.memory_space<vmem>>, vector<1x1x32x128xf32>
    %12 = vector.shape_cast %11 : vector<1x1x32x128xf32> to vector<32x128xf32>
    %13 = arith.maximumf %10, %12 : vector<32x128xf32>
    %c0_13 = arith.constant 0 : index
    %c3 = arith.constant 3 : index
    %c0_14 = arith.constant 0 : index
    %c0_15 = arith.constant 0 : index
    %14 = vector.load %arg3[%c0_13, %c3, %c0_14, %c0_15] : memref<1x4x32x128xf32, #tpu.memory_space<vmem>>, vector<1x1x32x128xf32>
    %15 = vector.shape_cast %14 : vector<1x1x32x128xf32> to vector<32x128xf32>
    %16 = arith.maximumf %13, %15 : vector<32x128xf32>
    %cst = arith.constant 0.000000e+00 : f32
    %17 = vector.broadcast %cst : f32 to vector<32x128xf32>
    %cst_16 = arith.constant 0.000000e+00 : f32
    %18 = vector.broadcast %cst_16 : f32 to vector<32x128xf32>
    %c0_17 = arith.constant 0 : index
    %c0_18 = arith.constant 0 : index
    %c0_19 = arith.constant 0 : index
    %c0_20 = arith.constant 0 : index
    %19 = vector.load %arg3[%c0_17, %c0_18, %c0_19, %c0_20] : memref<1x4x32x128xf32, #tpu.memory_space<vmem>>, vector<1x1x32x128xf32>
    %20 = vector.shape_cast %19 : vector<1x1x32x128xf32> to vector<32x128xf32>
    %21 = arith.subf %20, %16 : vector<32x128xf32>
    %22 = math.exp %21 : vector<32x128xf32>
    %23 = arith.addf %17, %22 : vector<32x128xf32>
    %c0_i32_21 = arith.constant 0 : i32
    %24 = vector.broadcast %c0_i32_21 : i32 to vector<32x128xi32>
    %25 = arith.cmpi eq, %5, %24 : vector<32x128xi32>
    %cst_22 = arith.constant 0.000000e+00 : f32
    %26 = vector.broadcast %cst_22 : f32 to vector<32x128xf32>
    %27 = arith.select %25, %22, %26 : vector<32x128xi1>, vector<32x128xf32>
    %28 = arith.addf %18, %27 : vector<32x128xf32>
    %c0_23 = arith.constant 0 : index
    %c1_24 = arith.constant 1 : index
    %c0_25 = arith.constant 0 : index
    %c0_26 = arith.constant 0 : index
    %29 = vector.load %arg3[%c0_23, %c1_24, %c0_25, %c0_26] : memref<1x4x32x128xf32, #tpu.memory_space<vmem>>, vector<1x1x32x128xf32>
    %30 = vector.shape_cast %29 : vector<1x1x32x128xf32> to vector<32x128xf32>
    %31 = arith.subf %30, %16 : vector<32x128xf32>
    %32 = math.exp %31 : vector<32x128xf32>
    %33 = arith.addf %23, %32 : vector<32x128xf32>
    %c1_i32 = arith.constant 1 : i32
    %34 = vector.broadcast %c1_i32 : i32 to vector<32x128xi32>
    %35 = arith.cmpi eq, %5, %34 : vector<32x128xi32>
    %cst_27 = arith.constant 0.000000e+00 : f32
    %36 = vector.broadcast %cst_27 : f32 to vector<32x128xf32>
    %37 = arith.select %35, %32, %36 : vector<32x128xi1>, vector<32x128xf32>
    %38 = arith.addf %28, %37 : vector<32x128xf32>
    %c0_28 = arith.constant 0 : index
    %c2_29 = arith.constant 2 : index
    %c0_30 = arith.constant 0 : index
    %c0_31 = arith.constant 0 : index
    %39 = vector.load %arg3[%c0_28, %c2_29, %c0_30, %c0_31] : memref<1x4x32x128xf32, #tpu.memory_space<vmem>>, vector<1x1x32x128xf32>
    %40 = vector.shape_cast %39 : vector<1x1x32x128xf32> to vector<32x128xf32>
    %41 = arith.subf %40, %16 : vector<32x128xf32>
    %42 = math.exp %41 : vector<32x128xf32>
    %43 = arith.addf %33, %42 : vector<32x128xf32>
    %c2_i32 = arith.constant 2 : i32
    %44 = vector.broadcast %c2_i32 : i32 to vector<32x128xi32>
    %45 = arith.cmpi eq, %5, %44 : vector<32x128xi32>
    %cst_32 = arith.constant 0.000000e+00 : f32
    %46 = vector.broadcast %cst_32 : f32 to vector<32x128xf32>
    %47 = arith.select %45, %42, %46 : vector<32x128xi1>, vector<32x128xf32>
    %48 = arith.addf %38, %47 : vector<32x128xf32>
    %c0_33 = arith.constant 0 : index
    %c3_34 = arith.constant 3 : index
    %c0_35 = arith.constant 0 : index
    %c0_36 = arith.constant 0 : index
    %49 = vector.load %arg3[%c0_33, %c3_34, %c0_35, %c0_36] : memref<1x4x32x128xf32, #tpu.memory_space<vmem>>, vector<1x1x32x128xf32>
    %50 = vector.shape_cast %49 : vector<1x1x32x128xf32> to vector<32x128xf32>
    %51 = arith.subf %50, %16 : vector<32x128xf32>
    %52 = math.exp %51 : vector<32x128xf32>
    %53 = arith.addf %43, %52 : vector<32x128xf32>
    %c3_i32 = arith.constant 3 : i32
    %54 = vector.broadcast %c3_i32 : i32 to vector<32x128xi32>
    %55 = arith.cmpi eq, %5, %54 : vector<32x128xi32>
    %cst_37 = arith.constant 0.000000e+00 : f32
    %56 = vector.broadcast %cst_37 : f32 to vector<32x128xf32>
    %57 = arith.select %55, %52, %56 : vector<32x128xi1>, vector<32x128xf32>
    %58 = arith.addf %48, %57 : vector<32x128xf32>
    %59 = arith.divf %58, %53 : vector<32x128xf32>
    %c0_38 = arith.constant 0 : index
    %c0_39 = arith.constant 0 : index
    %c0_40 = arith.constant 0 : index
    %c0_41 = arith.constant 0 : index
    %60 = vector.load %arg5[%c0_38, %c0_39, %c0_40, %c0_41] : memref<1x1x8x128xf32, #tpu.memory_space<vmem>>, vector<1x1x8x128xf32>
    %61 = vector.shape_cast %60 : vector<1x1x8x128xf32> to vector<8x128xf32>
    %62 = vector.shape_cast %59 : vector<32x128xf32> to vector<4x8x128xf32>
    %cst_42 = arith.constant dense<0.000000e+00> : vector<8x128xf32>
    %63 = vector.multi_reduction <add>, %62, %cst_42 [0] : vector<4x8x128xf32> to vector<8x128xf32>
    %64 = arith.addf %61, %63 : vector<8x128xf32>
    %c0_43 = arith.constant 0 : index
    %c0_44 = arith.constant 0 : index
    %c0_45 = arith.constant 0 : index
    %c0_46 = arith.constant 0 : index
    %65 = vector.load %arg5[%c0_43, %c0_44, %c0_45, %c0_46] : memref<1x1x8x128xf32, #tpu.memory_space<vmem>>, vector<1x1x8x128xf32>
    %66 = vector.shape_cast %65 : vector<1x1x8x128xf32> to vector<8x128xf32>
    %67 = vector.shape_cast %64 : vector<8x128xf32> to vector<1x1x8x128xf32>
    tpu.vector_store %arg5[%c0_43, %c0_44, %c0_45, %c0_46], %67 {strides = array<i32>} : memref<1x1x8x128xf32, #tpu.memory_space<vmem>>, vector<1x1x8x128xf32>,
    return
  }
  func.func @transform_0(%arg0: i32, %arg1: i32, %arg2: i32) -> (i32, i32, i32, i32) {
    %c1_i32 = arith.constant 1 : i32
    %0 = arith.muli %arg1, %c1_i32 : i32
    %1 = arith.addi %0, %arg2 : i32
    %c0_i32 = arith.constant 0 : i32
    %c0_i32_0 = arith.constant 0 : i32
    %c0_i32_1 = arith.constant 0 : i32
    return %arg0, %c0_i32, %1, %c0_i32_0 : i32, i32, i32, i32
  }
  func.func @transform_1(%arg0: i32, %arg1: i32, %arg2: i32) -> (i32, i32, i32) {
    %c1_i32 = arith.constant 1 : i32
    %0 = arith.muli %arg1, %c1_i32 : i32
    %1 = arith.addi %0, %arg2 : i32
    %c0_i32 = arith.constant 0 : i32
    %c0_i32_0 = arith.constant 0 : i32
    return %arg0, %1, %c0_i32 : i32, i32, i32
  }
  func.func @transform_2(%arg0: i32, %arg1: i32, %arg2: i32) -> (i32, i32, i32, i32) {
    %c0_i32 = arith.constant 0 : i32
    %c0_i32_0 = arith.constant 0 : i32
    %c0_i32_1 = arith.constant 0 : i32
    return %arg0, %arg1, %c0_i32, %c0_i32_0 : i32, i32, i32, i32
  }
}

</mosaic_0001>

<llo_original>
// kernel: tpu_custom_call.1
$region0: #{tpu_custom_call.1}
  #allocation0 [shape = 'u32[]', space=smem, size = 0x4, offset = 0x4, fixed_abs, tag = 'smem constant byte address 0x4 - core index']
  #allocation1 [shape = 'u32[144,128]{1,0:T(1,128)}', space=vmem, size = 0x12000, scoped, tag = 'internal scratch']
  %s0 = inlined_call_operand.hbm [shape: f32[2,4,32,128], index: 0, kind: input, shape index: {}]
  %s1 = inlined_call_operand.hbm [shape: s8[2,32,128], index: 1, kind: input, shape index: {}]
  %s2 = inlined_call_operand.hbm [shape: f32[2,1,8,128], index: 2, kind: output, shape index: {}]
  %s3 = sld [smem:[#allocation0]]
  $region53: #{tpu_custom_call.1} parent=0
    _
  %s5 = ssub.s32 1, %s3
  %s6 = scalar_select 0, %s5, %s3
  $region1: #{tpu_custom_call.1} parent=0
    #allocation2 [shape = 'u8[131072]{0}', space=vmem, size = 0x20000, scoped, tag = 'input window, operand 0']
    #allocation3 [shape = 's32[2]{0}', space=sflag, size = 0x8, scoped, tag = 'scoped memory for tpu_custom_call.1']
    #allocation4 [shape = 's32[2]{0}', space=sflag, size = 0x8, scoped, tag = 'scoped memory for tpu_custom_call.1']
    #allocation5 [shape = 'u8[8192]{0}', space=vmem, size = 0x2000, scoped, tag = 'input window, operand 1']
    #allocation6 [shape = 's32[2]{0}', space=sflag, size = 0x8, scoped, tag = 'scoped memory for tpu_custom_call.1']
    #allocation7 [shape = 'u8[8192]{0}', space=vmem, size = 0x2000, scoped, tag = 'output window, operand 0']
    %7 = vsyncpa [#allocation3], 0
    %s8 = scalar_lea.sflag [#allocation3], 1
    %9 = vsyncpa %s8, 0
    %10 = vsyncpa [#allocation6], 0
    %s11 = scalar_lea.sflag [#allocation6], 1
    %12 = vsyncpa %s11, 0
    %13 = vsyncpa [#allocation4], 0
    %s14 = scalar_lea.sflag [#allocation4], 1
    %15 = vsyncpa %s14, 0
    loop: start=0, step=1, limit=4
    $region2: #{tpu_custom_call.1} parent=1 // loop_pre_header
      _
    $region3: #{tpu_custom_call.1} parent=1 // loop_header
      %s17 = sphi 0, %s21
      %p18 = scmp.ge.s32.totalorder %s17, 4
      %s24 = sphi 0, %s43
      %s25 = sphi 0, %s39
      %s26 = sphi 0, %s35
      %s27 = sphi 0, %s24
      %s28 = sphi 0, %s25
      %s29 = sphi 0, %s26
      %s30 = sphi 0, %s27
      %s31 = sphi 0, %s28
      %s32 = sphi 0, %s29
      %s50 = sphi 0, %s52
      %s53 = sphi 0, %s50
      %s54 = sphi 0, %s53
      %s70 = sphi 0, %s54
      %s80 = sphi 0, %s82
      %s83 = sphi 0, %s80
      %s84 = sphi 0, %s83
      %s100 = sphi 0, %s84
      %s108 = sphi 0, %s110
      %s111 = sphi 0, %s108
      %s112 = sphi 0, %s111
      %s128 = sphi 0, %s112
    $region4: #{tpu_custom_call.1} parent=1 // loop_header_branch
      %20 = sbr.rel (%p18) target = $region8
    $region5: #{tpu_custom_call.1} parent=1 // loop_body
      %s22 = ssub.s32 %s17, 1
      %s23 = ssub.s32 %s17, 2
      %s33 = sadd.s32 1, %s26
      %p34 = scmp.ge.s32.totalorder %s33, 1
      %s35 = scalar_select %p34, 0, %s33
      %s36 = sadd.s32 1, %s25
      %s37 = scalar_select %p34, %s36, %s25
      %p38 = scmp.ge.s32.totalorder %s37, 1
      %s39 = scalar_select %p38, 0, %s37
      %s40 = sadd.s32 1, %s24
      %s41 = scalar_select %p38, %s40, %s24
      %p42 = scmp.ge.s32.totalorder %s41, 2
      %s43 = scalar_select %p42, 0, %s41
      %s44 = sadd.s32 %s25, %s26
      %s45 = sadd.s32 %s39, %s35
      %s46 = ssub.s32 %s24, %s43
      %s47 = ssub.s32 %s44, %s45
      %s48 = sor.u32 %s46, %s47
      %p49 = scmp.eq.s32.totalorder %s48, 0
      %s51 = sadd.s32 %s50, 1
      %s52 = scalar_select %p49, %s50, %s51
      %p55 = pneg %p49
      %p56 = scmp.eq.s32.totalorder %s17, 1
      %p57 = por %p55, %p56
      %p58 = scmp.ne.s32.totalorder %s50, %s53
      %p59 = scmp.eq.s32.totalorder %s17, 0
      %p60 = por %p58, %p59
      %p61 = scmp.ne.s32.totalorder %s50, %s53
      %p62 = scmp.eq.s32.totalorder %s22, 1
      %p63 = por %p61, %p62
      %p64 = scmp.ne.s32.totalorder %s53, %s54
      %p65 = scmp.eq.s32.totalorder %s22, 0
      %p66 = por %p64, %p65
      %p67 = scmp.ne.s32.totalorder %s53, %s54
      %p68 = scmp.eq.s32.totalorder %s23, 1
      %p69 = por %p67, %p68
      %p71 = scmp.ne.s32.totalorder %s54, %s70
      %p72 = scmp.eq.s32.totalorder %s23, 0
      %p73 = por %p71, %p72
      %s74 = sadd.s32 %s25, %s26
      %s75 = sadd.s32 %s39, %s35
      %s76 = ssub.s32 %s24, %s43
      %s77 = ssub.s32 %s74, %s75
      %s78 = sor.u32 %s76, %s77
      %p79 = scmp.eq.s32.totalorder %s78, 0
      %s81 = sadd.s32 %s80, 1
      %s82 = scalar_select %p79, %s80, %s81
      %p85 = pneg %p79
      %p86 = scmp.eq.s32.totalorder %s17, 1
      %p87 = por %p85, %p86
      %p88 = scmp.ne.s32.totalorder %s80, %s83
      %p89 = scmp.eq.s32.totalorder %s17, 0
      %p90 = por %p88, %p89
      %p91 = scmp.ne.s32.totalorder %s80, %s83
      %p92 = scmp.eq.s32.totalorder %s22, 1
      %p93 = por %p91, %p92
      %p94 = scmp.ne.s32.totalorder %s83, %s84
      %p95 = scmp.eq.s32.totalorder %s22, 0
      %p96 = por %p94, %p95
      %p97 = scmp.ne.s32.totalorder %s83, %s84
      %p98 = scmp.eq.s32.totalorder %s23, 1
      %p99 = por %p97, %p98
      %p101 = scmp.ne.s32.totalorder %s84, %s100
      %p102 = scmp.eq.s32.totalorder %s23, 0
      %p103 = por %p101, %p102
      %s104 = ssub.s32 %s24, %s43
      %s105 = ssub.s32 %s25, %s39
      %s106 = sor.u32 %s104, %s105
      %p107 = scmp.eq.s32.totalorder %s106, 0
      %s109 = sadd.s32 %s108, 1
      %s110 = scalar_select %p107, %s108, %s109
      %p113 = pneg %p107
      %p114 = scmp.eq.s32.totalorder %s17, 1
      %p115 = por %p113, %p114
      %p116 = scmp.ne.s32.totalorder %s108, %s111
      %p117 = scmp.eq.s32.totalorder %s17, 0
      %p118 = por %p116, %p117
      %p119 = scmp.ne.s32.totalorder %s108, %s111
      %p120 = scmp.eq.s32.totalorder %s22, 1
      %p121 = por %p119, %p120
      %p122 = scmp.ne.s32.totalorder %s111, %s112
      %p123 = scmp.eq.s32.totalorder %s22, 0
      %p124 = por %p122, %p123
      %p125 = scmp.ne.s32.totalorder %s111, %s112
      %p126 = scmp.eq.s32.totalorder %s23, 1
      %p127 = por %p125, %p126
      %p129 = scmp.ne.s32.totalorder %s112, %s128
      %p130 = scmp.eq.s32.totalorder %s23, 0
      %p131 = por %p129, %p130
      %p132 = scmp.le.s32.totalorder 1, %s17
      %p133 = scmp.lt.s32.totalorder %s17, 3
      %p134 = pnand %p132, %p133
      %p135 = pneg %p134
      // Predicated region
      $region9: #{tpu_custom_call.1} parent=5 // pred_check
        _
      $region10: #{tpu_custom_call.1} parent=5 // pred_check_branch
        %137 = sbr.rel (%p134) target = $region12
      $region11: #{tpu_custom_call.1} parent=5 // pred_region
        %s138 = ssub.s32 %s17, 1
      $region12: #{tpu_custom_call.1} parent=5 // pred_fallthru
        _
      %p139 = scmp.lt.s32.totalorder %s17, 2
      // Predicated region
      $region13: #{tpu_custom_call.1} parent=5 // pred_check
        %p140 = pneg %p139
      $region14: #{tpu_custom_call.1} parent=5 // pred_check_branch
        %142 = sbr.rel (%p140) target = $region16
      $region15: #{tpu_custom_call.1} parent=5 // pred_region
        // Predicated region
        $region17: #{tpu_custom_call.1} parent=15 // pred_check
          %p143 = pneg %p60
        $region18: #{tpu_custom_call.1} parent=15 // pred_check_branch
          %145 = sbr.rel (%p143) target = $region20
        $region19: #{tpu_custom_call.1} parent=15 // pred_region
          %s146 = sand.u32 %s50, 1
          %s147 = scalar_lea.sflag [#allocation3], %s146
          %s148 = sand.u32 %s50, 1
          %s149 = smul.addr %s148, 128
          %s150 = scalar_lea.vmem [#allocation2], %s149
          %s151 = sadd.s32 %s25, %s26
          %s152 = smul.u32 4, %s151
          %s154 = ssub.s32 2048, 2048
          %155 = vsyncadd %s147, %s154
          %s156 = smul.addr %s24, 16
          %s157 = sadd.s32 %s152, %s156
          %s158 = smul.addr %s157, 128
          %s159 = scalar_lea.hbm %s0, %s158
          %s160 = sshll.u32 %s150, 4
          %s161 = int_to_ptr.vmem [resolvable:$true] %s160
          %166 = dma.hbm_to_vmem [thread:$0]  %s159, 2048, %s161, %s147, 128, 128, 8
        $region20: #{tpu_custom_call.1} parent=15 // pred_fallthru
          _
        // Predicated region
        $region21: #{tpu_custom_call.1} parent=15 // pred_check
          %p167 = pneg %p90
        $region22: #{tpu_custom_call.1} parent=15 // pred_check_branch
          %169 = sbr.rel (%p167) target = $region24
        $region23: #{tpu_custom_call.1} parent=15 // pred_region
          %s170 = sand.u32 %s80, 1
          %s171 = scalar_lea.sflag [#allocation6], %s170
          %s172 = sand.u32 %s80, 1
          %s173 = smul.addr %s172, 8
          %s174 = scalar_lea.vmem [#allocation5], %s173
          %s175 = sadd.s32 %s25, %s26
          %s177 = ssub.s32 128, 128
          %178 = vsyncadd %s171, %s177
          %s179 = sadd.s32 %s175, %s24
          %s180 = smul.addr %s179, 128
          %s181 = scalar_lea.hbm %s1, %s180
          %s183 = sshll.u32 %s174, 4
          %s184 = int_to_ptr.vmem [resolvable:$true] %s183
          %186 = dma.hbm_to_vmem [thread:$0]  %s181, 128, %s184, %s171
        $region24: #{tpu_custom_call.1} parent=15 // pred_fallthru
          _
      $region16: #{tpu_custom_call.1} parent=5 // pred_fallthru
        _
      %p187 = scmp.le.s32.totalorder 1, %s17
      %p188 = scmp.lt.s32.totalorder %s17, 3
      %p189 = pnand %p187, %p188
      %p190 = pneg %p189
      // Predicated region
      $region25: #{tpu_custom_call.1} parent=5 // pred_check
        _
      $region26: #{tpu_custom_call.1} parent=5 // pred_check_branch
        %192 = sbr.rel (%p189) target = $region28
      $region27: #{tpu_custom_call.1} parent=5 // pred_region
        %s193 = ssub.s32 %s17, 1
        %s194 = sand.u32 %s53, 1
        %s195 = scalar_lea.sflag [#allocation3], %s194
        %s196 = sand.u32 %s53, 1
        %s197 = smul.addr %s196, 128
        %s198 = scalar_lea.vmem [#allocation2], %s197
        // Predicated region
        $region29: #{tpu_custom_call.1} parent=27 // pred_check
          %p199 = pneg %p66
        $region30: #{tpu_custom_call.1} parent=27 // pred_check_branch
          %201 = sbr.rel (%p199) target = $region32
        $region31: #{tpu_custom_call.1} parent=27 // pred_region
          %202 = dma.done %s195, 2048
        $region32: #{tpu_custom_call.1} parent=27 // pred_fallthru
          _
        %s203 = sand.u32 %s83, 1
        %s204 = scalar_lea.sflag [#allocation6], %s203
        %s205 = sand.u32 %s83, 1
        %s206 = smul.addr %s205, 8
        %s207 = scalar_lea.vmem [#allocation5], %s206
        // Predicated region
        $region33: #{tpu_custom_call.1} parent=27 // pred_check
          %p208 = pneg %p96
        $region34: #{tpu_custom_call.1} parent=27 // pred_check_branch
          %210 = sbr.rel (%p208) target = $region36
        $region35: #{tpu_custom_call.1} parent=27 // pred_region
          %211 = dma.done %s204, 128
        $region36: #{tpu_custom_call.1} parent=27 // pred_fallthru
          _
        %s212 = sand.u32 %s53, 1
        %s213 = scalar_lea.sflag [#allocation3], %s212
        %s214 = sand.u32 %s53, 1
        %s215 = smul.addr %s214, 128
        %s216 = scalar_lea.vmem [#allocation2], %s215
        %p217 = pneg %p66
        %p218 = pneg %p63
        %s219 = sand.u32 %s83, 1
        %s220 = scalar_lea.sflag [#allocation6], %s219
        %s221 = sand.u32 %s83, 1
        %s222 = smul.addr %s221, 8
        %s223 = scalar_lea.vmem [#allocation5], %s222
        %p224 = pneg %p96
        %p225 = pneg %p93
        %p226 = pneg %p124
        %p227 = pneg %p121
        %s228 = sand.u32 %s111, 1
        %s229 = scalar_lea.sflag [#allocation4], %s228
        %s230 = sand.u32 %s111, 1
        %s231 = smul.addr %s230, 8
        %s232 = scalar_lea.vmem [#allocation7], %s231
        %s233 = sadd.s32 %s28, %s29
        %s234 = smul.u32 4, %s233
        %s235 = sadd.s32 %s28, %s29
        %p236 = scmp.eq.s32.totalorder %s29, 0
        // Predicated region
        $region37: #{tpu_custom_call.1} parent=27 // pred_check
          %p237 = pneg %p236
        $region38: #{tpu_custom_call.1} parent=27 // pred_check_branch
          %239 = sbr.rel (%p237) target = $region40
        $region39: #{tpu_custom_call.1} parent=27 // pred_region
          %240 = vst [vmem:[%s232] sm:$0xff] 0.0
        $region40: #{tpu_custom_call.1} parent=27 // pred_fallthru
          _
        %v241 = vld [vmem:[%s207] sm:$0xff]
        %v242 = vunpack.c.0.s8 %v241
        %v243 = vunpack.c.1.s8 %v241
        %v244 = vunpack.c.2.s8 %v241
        %v245 = vunpack.c.3.s8 %v241
        %v246 = vld [vmem:[%s198] sm:$0xff]
        %v247 = vld [vmem:[%s198 + $0x8] sm:$0xff]
        %v248 = vld [vmem:[%s198 + $0x10] sm:$0xff]
        %v249 = vld [vmem:[%s198 + $0x18] sm:$0xff]
        %s250 = scalar_lea.vmem %s198, 32 [#allocation2]
        %v251 = vld [vmem:[%s250] sm:$0xff]
        %v252 = vld [vmem:[%s250 + $0x8] sm:$0xff]
        %v253 = vld [vmem:[%s250 + $0x10] sm:$0xff]
        %v254 = vld [vmem:[%s250 + $0x18] sm:$0xff]
        %v255 = vmax.f32 %v246, %v251
        %v256 = vmax.f32 %v247, %v252
        %v257 = vmax.f32 %v248, %v253
        %v258 = vmax.f32 %v249, %v254
        %s259 = scalar_lea.vmem %s198, 64 [#allocation2]
        %v260 = vld [vmem:[%s259] sm:$0xff]
        %v261 = vld [vmem:[%s259 + $0x8] sm:$0xff]
        %v262 = vld [vmem:[%s259 + $0x10] sm:$0xff]
        %v263 = vld [vmem:[%s259 + $0x18] sm:$0xff]
        %v264 = vmax.f32 %v255, %v260
        %v265 = vmax.f32 %v256, %v261
        %v266 = vmax.f32 %v257, %v262
        %v267 = vmax.f32 %v258, %v263
        %s268 = scalar_lea.vmem %s198, 96 [#allocation2]
        %v269 = vld [vmem:[%s268] sm:$0xff]
        %v270 = vld [vmem:[%s268 + $0x8] sm:$0xff]
        %v271 = vld [vmem:[%s268 + $0x10] sm:$0xff]
        %v272 = vld [vmem:[%s268 + $0x18] sm:$0xff]
        %v273 = vmax.f32 %v264, %v269
        %v274 = vmax.f32 %v265, %v270
        %v275 = vmax.f32 %v266, %v271
        %v276 = vmax.f32 %v267, %v272
        %v277 = vsub.f32 %v246, %v273
        %v278 = vsub.f32 %v247, %v274
        %v279 = vsub.f32 %v248, %v275
        %v280 = vsub.f32 %v249, %v276
        %v281 = vmul.f32 %v277, 1.442695
        %v282 = vpow.pop %v281
        %v283 = vmul.f32 %v278, 1.442695
        %v284 = vpow.pop %v283
        %v285 = vmul.f32 %v279, 1.442695
        %v286 = vpow.pop %v285
        %v287 = vmul.f32 %v280, 1.442695
        %v288 = vpow.pop %v287
        %v289 = vadd.f32 %v282, 0.0
        %v290 = vadd.f32 %v284, 0.0
        %v291 = vadd.f32 %v286, 0.0
        %v292 = vadd.f32 %v288, 0.0
        %vm293 = vcmp.eq.s32.totalorder %v242, 0
        %vm294 = vcmp.eq.s32.totalorder %v243, 0
        %vm295 = vcmp.eq.s32.totalorder %v244, 0
        %vm296 = vcmp.eq.s32.totalorder %v245, 0
        %v297 = vsel %vm293, %v282, 0.0
        %v298 = vsel %vm294, %v284, 0.0
        %v299 = vsel %vm295, %v286, 0.0
        %v300 = vsel %vm296, %v288, 0.0
        %v301 = vadd.f32 %v297, 0.0
        %v302 = vadd.f32 %v298, 0.0
        %v303 = vadd.f32 %v299, 0.0
        %v304 = vadd.f32 %v300, 0.0
        %v305 = vsub.f32 %v251, %v273
        %v306 = vsub.f32 %v252, %v274
        %v307 = vsub.f32 %v253, %v275
        %v308 = vsub.f32 %v254, %v276
        %v309 = vmul.f32 %v305, 1.442695
        %v310 = vpow.pop %v309
        %v311 = vmul.f32 %v306, 1.442695
        %v312 = vpow.pop %v311
        %v313 = vmul.f32 %v307, 1.442695
        %v314 = vpow.pop %v313
        %v315 = vmul.f32 %v308, 1.442695
        %v316 = vpow.pop %v315
        %v317 = vadd.f32 %v289, %v310
        %v318 = vadd.f32 %v290, %v312
        %v319 = vadd.f32 %v291, %v314
        %v320 = vadd.f32 %v292, %v316
        %vm321 = vcmp.eq.s32.totalorder %v242, 1
        %vm322 = vcmp.eq.s32.totalorder %v243, 1
        %vm323 = vcmp.eq.s32.totalorder %v244, 1
        %vm324 = vcmp.eq.s32.totalorder %v245, 1
        %v325 = vsel %vm321, %v310, 0.0
        %v326 = vsel %vm322, %v312, 0.0
        %v327 = vsel %vm323, %v314, 0.0
        %v328 = vsel %vm324, %v316, 0.0
        %v329 = vadd.f32 %v301, %v325
        %v330 = vadd.f32 %v302, %v326
        %v331 = vadd.f32 %v303, %v327
        %v332 = vadd.f32 %v304, %v328
        %v333 = vsub.f32 %v260, %v273
        %v334 = vsub.f32 %v261, %v274
        %v335 = vsub.f32 %v262, %v275
        %v336 = vsub.f32 %v263, %v276
        %v337 = vmul.f32 %v333, 1.442695
        %v338 = vpow.pop %v337
        %v339 = vmul.f32 %v334, 1.442695
        %v340 = vpow.pop %v339
        %v341 = vmul.f32 %v335, 1.442695
        %v342 = vpow.pop %v341
        %v343 = vmul.f32 %v336, 1.442695
        %v344 = vpow.pop %v343
        %v345 = vadd.f32 %v317, %v338
        %v346 = vadd.f32 %v318, %v340
        %v347 = vadd.f32 %v319, %v342
        %v348 = vadd.f32 %v320, %v344
        %vm349 = vcmp.eq.s32.totalorder %v242, 2
        %vm350 = vcmp.eq.s32.totalorder %v243, 2
        %vm351 = vcmp.eq.s32.totalorder %v244, 2
        %vm352 = vcmp.eq.s32.totalorder %v245, 2
        %v353 = vsel %vm349, %v338, 0.0
        %v354 = vsel %vm350, %v340, 0.0
        %v355 = vsel %vm351, %v342, 0.0
        %v356 = vsel %vm352, %v344, 0.0
        %v357 = vadd.f32 %v329, %v353
        %v358 = vadd.f32 %v330, %v354
        %v359 = vadd.f32 %v331, %v355
        %v360 = vadd.f32 %v332, %v356
        %v361 = vsub.f32 %v269, %v273
        %v362 = vsub.f32 %v270, %v274
        %v363 = vsub.f32 %v271, %v275
        %v364 = vsub.f32 %v272, %v276
        %v365 = vmul.f32 %v361, 1.442695
        %v366 = vpow.pop %v365
        %v367 = vmul.f32 %v362, 1.442695
        %v368 = vpow.pop %v367
        %v369 = vmul.f32 %v363, 1.442695
        %v370 = vpow.pop %v369
        %v371 = vmul.f32 %v364, 1.442695
        %v372 = vpow.pop %v371
        %v373 = vadd.f32 %v345, %v366
        %v374 = vadd.f32 %v346, %v368
        %v375 = vadd.f32 %v347, %v370
        %v376 = vadd.f32 %v348, %v372
        %vm377 = vcmp.eq.s32.totalorder %v242, 3
        %vm378 = vcmp.eq.s32.totalorder %v243, 3
        %vm379 = vcmp.eq.s32.totalorder %v244, 3
        %vm380 = vcmp.eq.s32.totalorder %v245, 3
        %v381 = vsel %vm377, %v366, 0.0
        %v382 = vsel %vm378, %v368, 0.0
        %v383 = vsel %vm379, %v370, 0.0
        %v384 = vsel %vm380, %v372, 0.0
        %v385 = vadd.f32 %v357, %v381
        %v386 = vadd.f32 %v358, %v382
        %v387 = vadd.f32 %v359, %v383
        %v388 = vadd.f32 %v360, %v384
        %v389 = vrcp.pop %v373
        %v390 = vmul.f32 %v385, %v389
        %v391 = vrcp.pop %v374
        %v392 = vmul.f32 %v386, %v391
        %v393 = vrcp.pop %v375
        %v394 = vmul.f32 %v387, %v393
        %v395 = vrcp.pop %v376
        %v396 = vmul.f32 %v388, %v395
        %v397 = vld [vmem:[%s232] sm:$0xff]
        %v398 = vadd.f32 %v390, %v392
        %v399 = vadd.f32 %v398, %v394
        %v400 = vadd.f32 %v399, %v396
        %v401 = vadd.f32 %v397, %v400
        %402 = vst [vmem:[%s232] sm:$0xff] %v401
        %s403 = sand.u32 %s111, 1
        %s404 = scalar_lea.sflag [#allocation4], %s403
        %s405 = sand.u32 %s111, 1
        %s406 = smul.addr %s405, 8
        %s407 = scalar_lea.vmem [#allocation7], %s406
        // Predicated region
        $region41: #{tpu_custom_call.1} parent=27 // pred_check
          %p408 = pneg %p121
        $region42: #{tpu_custom_call.1} parent=27 // pred_check_branch
          %410 = sbr.rel (%p408) target = $region44
        $region43: #{tpu_custom_call.1} parent=27 // pred_region
          %s412 = ssub.s32 128, 128
          %413 = vsyncadd %s404, %s412
          %s414 = sadd.s32 %s28, %s27
          %s415 = smul.addr %s414, 128
          %s416 = scalar_lea.hbm %s2, %s415
          %s418 = sshll.u32 %s407, 4
          %s419 = int_to_ptr.vmem [resolvable:$true] %s418
          %421 = dma.vmem_to_hbm [thread:$0]  %s419, 128, %s416, %s404
        $region44: #{tpu_custom_call.1} parent=27 // pred_fallthru
          _
      $region28: #{tpu_custom_call.1} parent=5 // pred_fallthru
        _
      %p422 = scmp.le.s32.totalorder 2, %s17
      // Predicated region
      $region45: #{tpu_custom_call.1} parent=5 // pred_check
        %p423 = pneg %p422
      $region46: #{tpu_custom_call.1} parent=5 // pred_check_branch
        %425 = sbr.rel (%p423) target = $region48
      $region47: #{tpu_custom_call.1} parent=5 // pred_region
        %s426 = ssub.s32 %s17, 2
        // Predicated region
        $region49: #{tpu_custom_call.1} parent=47 // pred_check
          %p427 = pneg %p127
        $region50: #{tpu_custom_call.1} parent=47 // pred_check_branch
          %429 = sbr.rel (%p427) target = $region52
        $region51: #{tpu_custom_call.1} parent=47 // pred_region
          %s430 = sand.u32 %s112, 1
          %s431 = scalar_lea.sflag [#allocation4], %s430
          %s432 = sand.u32 %s112, 1
          %s433 = smul.addr %s432, 8
          %s434 = scalar_lea.vmem [#allocation7], %s433
          %435 = dma.done %s431, 128
        $region52: #{tpu_custom_call.1} parent=47 // pred_fallthru
          _
      $region48: #{tpu_custom_call.1} parent=5 // pred_fallthru
        _
    $region6: #{tpu_custom_call.1} parent=1 // loop_footer
      %s21 = sadd.s32 1, %s17
    $region7: #{tpu_custom_call.1} parent=1 // loop_footer_branch
      %16 = sbr.rel target = $region3
    $region8: #{tpu_custom_call.1} parent=1 // loop_exit
      _
    %436 = vsyncpa [#allocation3], 1
    %s437 = scalar_lea.sflag [#allocation3], 1
    %438 = vsyncpa %s437, 1
    %439 = vsyncpa [#allocation6], 1
    %s440 = scalar_lea.sflag [#allocation6], 1
    %441 = vsyncpa %s440, 1
    %442 = vsyncpa [#allocation4], 1
    %s443 = scalar_lea.sflag [#allocation4], 1
    %444 = vsyncpa %s443, 1

</llo_original>
